<compile_context>
chip_gen: v7x
topology: tpu7x:2x2x1
jax: 0.10.0
libtpu: 0.0.40
codegen_flags: <defaults>
</compile_context>

<pallas_src>
import jax
import jax.numpy as jnp
from jax.experimental import pallas as pl
from jax.experimental.pallas import tpu as pltpu


# ----------------------------------------------------------------------------
# Small path: whole array resident in VMEM, gridless, no aliasing tricks.
# ----------------------------------------------------------------------------
def _identity_vmem_kernel(tok_ref, out_ref):
    # The entire forward pass: read out the persistent tokens unchanged.
    out_ref[...] = tok_ref[...]


def _forward_gridless_vmem(tokens: jax.Array) -> jax.Array:
    return pl.pallas_call(
        _identity_vmem_kernel,
        out_shape=jax.ShapeDtypeStruct(tokens.shape, tokens.dtype),
        in_specs=[pl.BlockSpec(memory_space=pltpu.MemorySpace.VMEM)],
        out_specs=pl.BlockSpec(memory_space=pltpu.MemorySpace.VMEM),
    )(tokens)


# ----------------------------------------------------------------------------
# Large path: gridless HBM -> HBM DMA (no VMEM staging, no grid steps).
# ----------------------------------------------------------------------------
def _make_dma_copy_kernel(row_splits):
    """Kernel that copies src -> dst with one DMA per (static) row chunk."""

    def kernel(src_hbm, dst_hbm, sems):
        copies = []
        for i, (start, size) in enumerate(row_splits):
            cp = pltpu.make_async_copy(
                src_hbm.at[pl.ds(start, size), :],
                dst_hbm.at[pl.ds(start, size), :],
                sems.at[i],
            )
            cp.start()
            copies.append(cp)
        # All descriptors are in flight; now drain them.
        for cp in copies:
            cp.wait()

    return kernel


def _forward_hbm_dma(tokens: jax.Array, num_chunks: int = 1) -> jax.Array:
    n, d = tokens.shape
    num_chunks = max(1, min(num_chunks, n))
    chunk_rows = -(-n // num_chunks)  # ceil div
    row_splits = []
    start = 0
    while start < n:
        size = min(chunk_rows, n - start)
        row_splits.append((start, size))
        start += size

    return pl.pallas_call(
        _make_dma_copy_kernel(tuple(row_splits)),
        out_shape=jax.ShapeDtypeStruct((n, d), tokens.dtype),
        in_specs=[pl.BlockSpec(memory_space=pl.ANY)],
        out_specs=pl.BlockSpec(memory_space=pl.ANY),
        scratch_shapes=[pltpu.SemaphoreType.DMA((len(row_splits),))],
    )(tokens)


# ----------------------------------------------------------------------------
# Dispatcher
# ----------------------------------------------------------------------------
# Below this size the whole array trivially fits in VMEM and the gridless
# VMEM copy is at least as good as issuing a DMA descriptor from the kernel.
_VMEM_PATH_MAX_BYTES = 64 * 1024
# Above this size, split the HBM->HBM copy into a few concurrent DMAs so
# multiple DMA queues can contribute (modest free win on v7x's 3.2 TB/s HBM).
_CHUNKED_DMA_MIN_BYTES = 128 * 1024 * 1024
_NUM_DMA_CHUNKS = 4


def persistent_memory_forward(persistent_tokens: jax.Array) -> jax.Array:
    """Returns the [num_tokens, dim] persistent-memory tokens via a Pallas kernel.

    Note: the cheapest correct implementation is simply
    `return persistent_tokens` (the op is an identity); the Pallas path is kept
    per the kernel-boundary spec.
    """
    n, d = persistent_tokens.shape
    total_bytes = n * d * jnp.dtype(persistent_tokens.dtype).itemsize
    if total_bytes <= _VMEM_PATH_MAX_BYTES:
        return _forward_gridless_vmem(persistent_tokens)
    num_chunks = _NUM_DMA_CHUNKS if total_bytes >= _CHUNKED_DMA_MIN_BYTES else 1
    return _forward_hbm_dma(persistent_tokens, num_chunks=num_chunks)


class PersistentMemory:
    """JAX/Pallas port of the PyTorch PersistentMemory module."""

    def __init__(self, num_tokens: int = 2, dim: int = 64, key=None,
                 dtype=jnp.float32):
        if key is None:
            key = jax.random.PRNGKey(0)
        # Deterministic init mirroring torch.randn(num_tokens, dim).
        self.persistent_tokens = jax.random.normal(
            key, (num_tokens, dim), dtype=dtype
        )
        self._frozen = False

    def freeze(self):
        # TODO(synk): no autograd machinery here; flag kept for API parity only.
        self._frozen = True

    def unfreeze(self):
        self._frozen = False

    def forward(self) -> jax.Array:
        return persistent_memory_forward(self.persistent_tokens)

    __call__ = forward


if __name__ == "__main__":
    key = jax.random.PRNGKey(0)
    num_tokens, dim = 2, 64

    # Default module-sized case (exercises the gridless VMEM path).
    module = PersistentMemory(num_tokens=num_tokens, dim=dim, key=key)
    out = jax.block_until_ready(module())
    assert out.shape == (num_tokens, dim)
    assert bool(jnp.array_equal(out, module.persistent_tokens))

    # Larger, deliberately non-(8,128)-aligned parameter: exercises the
    # gridless single HBM->HBM DMA path.
    big = jax.random.normal(jax.random.PRNGKey(1), (257, 200), dtype=jnp.float32)
    out_big = jax.block_until_ready(persistent_memory_forward(big))
    assert out_big.shape == big.shape
    assert bool(jnp.array_equal(out_big, big))

    # Explicitly exercise the chunked multi-DMA variant at a small size to
    # verify correctness of the start-all / wait-all pattern.
    out_chunked = jax.block_until_ready(_forward_hbm_dma(big, num_chunks=2))
    assert bool(jnp.array_equal(out_chunked, big))

    print("KERNEL_OK")
</pallas_src>

<mosaic_0001>
module attributes {stable_mosaic.version = 11 : i64} {
  func.func @_identity_vmem_kernel(%arg0: memref<2x64xf32, #tpu.memory_space<vmem>>, %arg1: memref<2x64xf32, #tpu.memory_space<vmem>>) attributes {dimension_semantics = [], scalar_prefetch = 0 : i64, scratch_operands = 0 : i64, tpu.core_type = #tpu.core_type<tc>} {
    %c0 = arith.constant 0 : index
    %c0_0 = arith.constant 0 : index
    %0 = vector.load %arg0[%c0, %c0_0] : memref<2x64xf32, #tpu.memory_space<vmem>>, vector<2x64xf32>
    %c0_1 = arith.constant 0 : index
    %c0_2 = arith.constant 0 : index
    %1 = vector.load %arg1[%c0_1, %c0_2] : memref<2x64xf32, #tpu.memory_space<vmem>>, vector<2x64xf32>
    tpu.vector_store %arg1[%c0_1, %c0_2], %0 {strides = array<i32>} : memref<2x64xf32, #tpu.memory_space<vmem>>, vector<2x64xf32>,
    return
  }
}

</mosaic_0001>

<llo_original>
// kernel: tpu_custom_call.1
$region0: #{tpu_custom_call.1}
  #allocation0 [shape = 'u32[]', space=smem, size = 0x4, offset = 0x4, fixed_abs, tag = 'smem constant byte address 0x4 - core index']
  #allocation1 [shape = 'u32[144,128]{1,0:T(1,128)}', space=vmem, size = 0x12000, scoped, tag = 'internal scratch']
  %s0 = inlined_call_operand.hbm [shape: f32[2,64], index: 0, kind: input, shape index: {}]
  %s1 = inlined_call_operand.hbm [shape: f32[2,64], index: 1, kind: output, shape index: {}]
  %s2 = sld [smem:[#allocation0]]
  $region18: #{tpu_custom_call.1} parent=0
    _
  %s4 = ssub.s32 1, %s2
  %s5 = scalar_select 0, %s4, %s2
  $region1: #{tpu_custom_call.1} parent=0
    #allocation2 [shape = 'u8[1024]{0}', space=vmem, size = 0x400, scoped, tag = 'input window, operand 0, single buffered']
    #allocation3 [shape = 's32[1]{0}', space=sflag, size = 0x4, scoped, tag = 'scoped memory for tpu_custom_call.1']
    #allocation4 [shape = 's32[1]{0}', space=sflag, size = 0x4, scoped, tag = 'scoped memory for tpu_custom_call.1']
    #allocation5 [shape = 'u8[1024]{0}', space=vmem, size = 0x400, scoped, tag = 'output window, operand 0, single buffered']
    %6 = vsyncpa [#allocation3], 0
    %7 = vsyncpa [#allocation4], 0
    // Predicated region
    $region2: #{tpu_custom_call.1} parent=1 // pred_check
      _
    $region3: #{tpu_custom_call.1} parent=1 // pred_check_branch
      %9 = sbr.rel (0) target = $region5
    $region4: #{tpu_custom_call.1} parent=1 // pred_region
      %s11 = ssub.s32 32, 32
      %12 = vsyncadd [#allocation3], %s11
      %s14 = sshll.u32 [#allocation2], 4
      %s15 = int_to_ptr.vmem [resolvable:$true] %s14
      %17 = dma.hbm_to_vmem [thread:$0]  %s0, 32, %s15, [#allocation3]
    $region5: #{tpu_custom_call.1} parent=1 // pred_fallthru
      _
    // Predicated region
    $region6: #{tpu_custom_call.1} parent=1 // pred_check
      _
    $region7: #{tpu_custom_call.1} parent=1 // pred_check_branch
      %19 = sbr.rel (0) target = $region9
    $region8: #{tpu_custom_call.1} parent=1 // pred_region
      %20 = dma.done [#allocation3], 32
    $region9: #{tpu_custom_call.1} parent=1 // pred_fallthru
      _
    %v21 = vld [vmem:[#allocation2] sm:$0x3]
    %vm22 = vcmask 517120
    %23 = vst.msk [vmem:[#allocation5] sm:$0x3] %vm22, %v21
    // Predicated region
    $region10: #{tpu_custom_call.1} parent=1 // pred_check
      _
    $region11: #{tpu_custom_call.1} parent=1 // pred_check_branch
      %25 = sbr.rel (0) target = $region13
    $region12: #{tpu_custom_call.1} parent=1 // pred_region
      %s27 = ssub.s32 32, 32
      %28 = vsyncadd [#allocation4], %s27
      %s30 = sshll.u32 [#allocation5], 4
      %s31 = int_to_ptr.vmem [resolvable:$true] %s30
      %33 = dma.vmem_to_hbm [thread:$0]  %s31, 32, %s1, [#allocation4]
    $region13: #{tpu_custom_call.1} parent=1 // pred_fallthru
      _
    // Predicated region
    $region14: #{tpu_custom_call.1} parent=1 // pred_check
      _
    $region15: #{tpu_custom_call.1} parent=1 // pred_check_branch
      %35 = sbr.rel (0) target = $region17
    $region16: #{tpu_custom_call.1} parent=1 // pred_region
      %36 = dma.done [#allocation4], 32
    $region17: #{tpu_custom_call.1} parent=1 // pred_fallthru
      _
    %37 = vsyncpa [#allocation3], 1
    %38 = vsyncpa [#allocation4], 1

</llo_original>
